<compile_context>
chip_gen: v7x
topology: tpu7x:2x2x1
jax: 0.10.0
libtpu: 0.0.40
codegen_flags: <defaults>
</compile_context>

<pallas_src>
import math

import jax
import jax.numpy as jnp
from jax.experimental import pallas as pl
from jax.experimental.pallas import tpu as pltpu


def _round_up(x, m):
    return ((x + m - 1) // m) * m


# ----------------------------- Pallas kernel ------------------------------- #

def _embed_kernel(ids_ref, pos_ref, w_ref, pe_ref, o_ref):
    # ids_ref : VMEM (T, 1) int32   token ids for this tile (-1 padding -> zero row)
    # pos_ref : VMEM (T, 1) int32   sequence positions for this tile
    # w_ref   : VMEM (V, E)         full embedding table, resident (constant block)
    # pe_ref  : VMEM (P, E)         positional-encoding rows, resident (constant block)
    # o_ref   : VMEM (T, E)         dense output tile
    T = ids_ref.shape[0]
    V = w_ref.shape[0]
    P = pe_ref.shape[0]

    ids = ids_ref[...]  # (T, 1)
    pos = pos_ref[...]  # (T, 1)

    # Gather-as-matmul: one-hot(ids) @ W fused with one-hot(pos) @ PE on the MXU.
    tok_oh = (jax.lax.broadcasted_iota(jnp.int32, (T, V), 1) == ids).astype(w_ref.dtype)
    pos_oh = (jax.lax.broadcasted_iota(jnp.int32, (T, P), 1) == pos).astype(pe_ref.dtype)

    acc = jnp.dot(tok_oh, w_ref[...],
                  preferred_element_type=jnp.float32,
                  precision=jax.lax.Precision.HIGHEST)
    acc = acc + jnp.dot(pos_oh, pe_ref[...],
                        preferred_element_type=jnp.float32,
                        precision=jax.lax.Precision.HIGHEST)
    o_ref[...] = acc.astype(o_ref.dtype)


def _embed_tokens(ids_flat, pos_flat, token_weight, pe_rows, *, tile_tokens=256):
    """ids_flat, pos_flat: [N] int32; token_weight: [V, E]; pe_rows: [P, E]. Returns [N, E]."""
    N = int(ids_flat.shape[0])
    V, E = token_weight.shape
    P = pe_rows.shape[0]

    T = min(tile_tokens, _round_up(N, 8))        # sublane-dense tile height
    N_pad = _round_up(N, T)

    ids = jnp.full((N_pad,), -1, jnp.int32).at[:N].set(ids_flat.astype(jnp.int32))
    pos = jnp.full((N_pad,), -1, jnp.int32).at[:N].set(pos_flat.astype(jnp.int32))
    ids = ids.reshape(N_pad, 1)
    pos = pos.reshape(N_pad, 1)

    itemsize = jnp.dtype(token_weight.dtype).itemsize
    # resident table + resident PE (x2 for buffering) + double-buffered id/pos/out tiles + margin
    vmem_bytes = int(2 * V * E * itemsize + 2 * P * E * itemsize
                     + 2 * 2 * T * 128 * 4 + 2 * T * E * itemsize) + (4 << 20)

    out = pl.pallas_call(
        _embed_kernel,
        out_shape=jax.ShapeDtypeStruct((N_pad, E), token_weight.dtype),
        grid_spec=pltpu.PrefetchScalarGridSpec(
            num_scalar_prefetch=0,
            grid=(N_pad // T,),
            in_specs=[
                pl.BlockSpec((T, 1), lambda i: (i, 0)),   # ids tile
                pl.BlockSpec((T, 1), lambda i: (i, 0)),   # pos tile
                pl.BlockSpec((V, E), lambda i: (0, 0)),   # embedding table (resident)
                pl.BlockSpec((P, E), lambda i: (0, 0)),   # PE rows (resident)
            ],
            out_specs=pl.BlockSpec((T, E), lambda i: (i, 0)),
        ),
        compiler_params=pltpu.CompilerParams(
            dimension_semantics=("parallel",),
            vmem_limit_bytes=vmem_bytes,
        ),
    )(ids, pos, token_weight, pe_rows)
    return out[:N]


def embedding_forward(sequence, token_weight, pe_table, step=None, tile_tokens=256):
    """sequence: [S, B] int ids; token_weight: [V, E] f32; pe_table: [max_len, E] f32."""
    S, B = sequence.shape
    V, E = token_weight.shape

    # TODO(synk): nn.Dropout(p=0.1) is identity at inference; training-mode dropout not applied.
    if step is None:
        ids_flat = sequence.reshape(-1).astype(jnp.int32)            # row-major: n = s*B + b
        pos_flat = jnp.repeat(jnp.arange(S, dtype=jnp.int32), B)     # position = n // B
        P = min(_round_up(S, 8), pe_table.shape[0])
        out = _embed_tokens(ids_flat, pos_flat, token_weight, pe_table[:P],
                            tile_tokens=tile_tokens)
        return out.reshape(S, B, E)

    # decode path: compute only position `step` -> [1, B, E]
    step = int(step)
    ids_flat = sequence[step].astype(jnp.int32)                      # (B,)
    pos_flat = jnp.full((B,), step, dtype=jnp.int32)
    P = min(_round_up(step + 1, 8), pe_table.shape[0])
    out = _embed_tokens(ids_flat, pos_flat, token_weight, pe_table[:P],
                        tile_tokens=tile_tokens)
    return out[None]


# --------------------------- parameter construction ------------------------ #

def make_positional_encoding(d_model, max_len=512):
    position = jnp.arange(max_len, dtype=jnp.float32)[:, None]
    div_term = jnp.exp(
        jnp.arange(0, d_model, 2, dtype=jnp.float32) * -(math.log(10000.0) / d_model)
    )
    pe = jnp.zeros((max_len, d_model), dtype=jnp.float32)
    pe = pe.at[:, 0::2].set(jnp.sin(position * div_term))
    pe = pe.at[:, 1::2].set(jnp.cos(position * div_term))
    return pe


def make_token_embedding(key, vocab_size, embed_size, padding_idx=1):
    # nn.Embedding default init: N(0, 1), with the padding_idx row zeroed.
    w = jax.random.normal(key, (vocab_size, embed_size), dtype=jnp.float32)
    w = w.at[padding_idx, :].set(0.0)
    return w


# ----------------------------------- main ----------------------------------- #

if __name__ == "__main__":
    vocab_size = 64
    embed_size = 128     # lane-dense last dim
    padding_idx = 1
    max_len = 512
    S, B = 8, 4          # sequence is seq-first: [S, B]

    key = jax.random.PRNGKey(0)
    k_w, k_ids = jax.random.split(key)

    token_weight = make_token_embedding(k_w, vocab_size, embed_size, padding_idx)
    pe_table = make_positional_encoding(embed_size, max_len)

    sequence = jax.random.randint(k_ids, (S, B), 0, vocab_size, dtype=jnp.int32)
    sequence = sequence.at[-1, :].set(padding_idx)   # sprinkle in padding tokens

    out = jax.block_until_ready(embedding_forward(sequence, token_weight, pe_table))

    # pure-JAX reference: token lookup + broadcasted positional encoding
    ref = token_weight[sequence] + pe_table[:S][:, None, :]

    assert out.shape == (S, B, embed_size), out.shape
    assert jnp.allclose(out, ref, atol=1e-5, rtol=1e-5), "mismatch vs reference"

    # decode-style `step` path
    out_step = jax.block_until_ready(
        embedding_forward(sequence, token_weight, pe_table, step=3))
    assert out_step.shape == (1, B, embed_size)
    assert jnp.allclose(out_step, ref[3][None], atol=1e-5, rtol=1e-5)

    print("KERNEL_OK")
</pallas_src>

<mosaic_0001>
module attributes {stable_mosaic.version = 11 : i64} {
  func.func @_embed_kernel(%arg0: i32, %arg1: memref<32x1xi32, #tpu.memory_space<vmem>>, %arg2: memref<32x1xi32, #tpu.memory_space<vmem>>, %arg3: memref<64x128xf32, #tpu.memory_space<vmem>>, %arg4: memref<8x128xf32, #tpu.memory_space<vmem>>, %arg5: memref<32x128xf32, #tpu.memory_space<vmem>>) attributes {dimension_semantics = [#tpu.dimension_semantics<parallel>], iteration_bounds = array<i64: 1>, scalar_prefetch = 0 : i64, scratch_operands = 0 : i64, tpu.core_type = #tpu.core_type<tc>, window_params = [{transform_indices = @transform_0, window_bounds = array<i64: 32, 1>}, {transform_indices = @transform_1, window_bounds = array<i64: 32, 1>}, {pipeline_mode = #tpu.pipeline_mode<synchronous>, transform_indices = @transform_2, window_bounds = array<i64: 64, 128>}, {pipeline_mode = #tpu.pipeline_mode<synchronous>, transform_indices = @transform_3, window_bounds = array<i64: 8, 128>}, {transform_indices = @transform_4, window_bounds = array<i64: 32, 128>}]} {
    %c0 = arith.constant 0 : index
    %c0_0 = arith.constant 0 : index
    %0 = vector.load %arg1[%c0, %c0_0] : memref<32x1xi32, #tpu.memory_space<vmem>>, vector<32x1xi32>
    %c0_1 = arith.constant 0 : index
    %c0_2 = arith.constant 0 : index
    %1 = vector.load %arg2[%c0_1, %c0_2] : memref<32x1xi32, #tpu.memory_space<vmem>>, vector<32x1xi32>
    %2 = tpu.iota {dimensions = array<i32: 1>} : vector<32x64xi32>
    %3 = vector.broadcast %0 : vector<32x1xi32> to vector<32x64xi32>
    %4 = arith.cmpi eq, %2, %3 : vector<32x64xi32>
    %5 = arith.extui %4 : vector<32x64xi1> to vector<32x64xi32>
    %6 = arith.sitofp %5 : vector<32x64xi32> to vector<32x64xf32>
    %7 = tpu.iota {dimensions = array<i32: 1>} : vector<32x8xi32>
    %8 = vector.broadcast %1 : vector<32x1xi32> to vector<32x8xi32>
    %9 = arith.cmpi eq, %7, %8 : vector<32x8xi32>
    %10 = arith.extui %9 : vector<32x8xi1> to vector<32x8xi32>
    %11 = arith.sitofp %10 : vector<32x8xi32> to vector<32x8xf32>
    %c0_3 = arith.constant 0 : index
    %c0_4 = arith.constant 0 : index
    %12 = vector.load %arg3[%c0_3, %c0_4] : memref<64x128xf32, #tpu.memory_space<vmem>>, vector<64x128xf32>
    %cst = arith.constant dense<0.000000e+00> : vector<32x128xf32>
    %13 = tpu.matmul %6, %12, %cst {dimension_numbers = #tpu.dot_dimension_numbers<[1], [0], [0], [1], [0, 0, 1, 1], [], []>, precision = #tpu.contract_precision<fp32>} : vector<32x64xf32>, vector<64x128xf32>, vector<32x128xf32> -> vector<32x128xf32>
    %c0_5 = arith.constant 0 : index
    %c0_6 = arith.constant 0 : index
    %14 = vector.load %arg4[%c0_5, %c0_6] : memref<8x128xf32, #tpu.memory_space<vmem>>, vector<8x128xf32>
    %cst_7 = arith.constant dense<0.000000e+00> : vector<32x128xf32>
    %15 = tpu.matmul %11, %14, %cst_7 {dimension_numbers = #tpu.dot_dimension_numbers<[1], [0], [0], [1], [0, 0, 1, 1], [], []>, precision = #tpu.contract_precision<fp32>} : vector<32x8xf32>, vector<8x128xf32>, vector<32x128xf32> -> vector<32x128xf32>
    %16 = arith.addf %13, %15 : vector<32x128xf32>
    %c0_8 = arith.constant 0 : index
    %c0_9 = arith.constant 0 : index
    %17 = vector.load %arg5[%c0_8, %c0_9] : memref<32x128xf32, #tpu.memory_space<vmem>>, vector<32x128xf32>
    tpu.vector_store %arg5[%c0_8, %c0_9], %16 {strides = array<i32>} : memref<32x128xf32, #tpu.memory_space<vmem>>, vector<32x128xf32>,
    return
  }
  func.func @transform_0(%arg0: i32) -> (i32, i32) {
    %c0_i32 = arith.constant 0 : i32
    %c0_i32_0 = arith.constant 0 : i32
    return %arg0, %c0_i32 : i32, i32
  }
  func.func @transform_1(%arg0: i32) -> (i32, i32) {
    %c0_i32 = arith.constant 0 : i32
    %c0_i32_0 = arith.constant 0 : i32
    return %arg0, %c0_i32 : i32, i32
  }
  func.func @transform_2(%arg0: i32) -> (i32, i32) {
    %c0_i32 = arith.constant 0 : i32
    %c0_i32_0 = arith.constant 0 : i32
    %c0_i32_1 = arith.constant 0 : i32
    return %c0_i32, %c0_i32_0 : i32, i32
  }
  func.func @transform_3(%arg0: i32) -> (i32, i32) {
    %c0_i32 = arith.constant 0 : i32
    %c0_i32_0 = arith.constant 0 : i32
    %c0_i32_1 = arith.constant 0 : i32
    return %c0_i32, %c0_i32_0 : i32, i32
  }
  func.func @transform_4(%arg0: i32) -> (i32, i32) {
    %c0_i32 = arith.constant 0 : i32
    %c0_i32_0 = arith.constant 0 : i32
    return %arg0, %c0_i32 : i32, i32
  }
}

</mosaic_0001>

<llo_original>
// kernel: tpu_custom_call.1
$region0: #{tpu_custom_call.1}
  #allocation0 [shape = 'u32[]', space=smem, size = 0x4, offset = 0x4, fixed_abs, tag = 'smem constant byte address 0x4 - core index']
  #allocation1 [shape = 'u32[144,128]{1,0:T(1,128)}', space=vmem, size = 0x12000, scoped, tag = 'internal scratch']
  %s0 = inlined_call_operand.vmem [shape: s32[32,1], index: 0, kind: input, shape index: {}]
  %s1 = inlined_call_operand.vmem [shape: s32[32,1], index: 1, kind: input, shape index: {}]
  %s2 = inlined_call_operand.vmem [shape: f32[64,128], index: 2, kind: input, shape index: {}]
  %s3 = inlined_call_operand.vmem [shape: f32[8,128], index: 3, kind: input, shape index: {}]
  %s4 = inlined_call_operand.hbm [shape: f32[32,128], index: 4, kind: output, shape index: {}]
  %s5 = sld [smem:[#allocation0]]
  $region26: #{tpu_custom_call.1} parent=0
    _
  %s7 = ssub.s32 1, %s5
  %s8 = scalar_select 0, %s7, %s5
  $region1: #{tpu_custom_call.1} parent=0
    #allocation2 [shape = 'u8[16384]{0}', space=vmem, size = 0x4000, scoped, tag = 'output window, operand 0, single buffered']
    #allocation3 [shape = 's32[1]{0}', space=sflag, size = 0x4, scoped, tag = 'scoped memory for tpu_custom_call.1']
    %9 = vsyncpa [#allocation3], 0
    // Predicated region
    $region2: #{tpu_custom_call.1} parent=1 // pred_check
      _
    $region3: #{tpu_custom_call.1} parent=1 // pred_check_branch
      %11 = sbr.rel (0) target = $region5
    $region4: #{tpu_custom_call.1} parent=1 // pred_region
      _
    $region5: #{tpu_custom_call.1} parent=1 // pred_fallthru
      _
    // Predicated region
    $region6: #{tpu_custom_call.1} parent=1 // pred_check
      _
    $region7: #{tpu_custom_call.1} parent=1 // pred_check_branch
      %13 = sbr.rel (0) target = $region9
    $region8: #{tpu_custom_call.1} parent=1 // pred_region
      _
    $region9: #{tpu_custom_call.1} parent=1 // pred_fallthru
      _
    // Predicated region
    $region10: #{tpu_custom_call.1} parent=1 // pred_check
      _
    $region11: #{tpu_custom_call.1} parent=1 // pred_check_branch
      %15 = sbr.rel (0) target = $region13
    $region12: #{tpu_custom_call.1} parent=1 // pred_region
      _
    $region13: #{tpu_custom_call.1} parent=1 // pred_fallthru
      _
    // Predicated region
    $region14: #{tpu_custom_call.1} parent=1 // pred_check
      _
    $region15: #{tpu_custom_call.1} parent=1 // pred_check_branch
      %17 = sbr.rel (0) target = $region17
    $region16: #{tpu_custom_call.1} parent=1 // pred_region
      _
    $region17: #{tpu_custom_call.1} parent=1 // pred_fallthru
      _
    %v18 = vld [vmem:[%s0] sm:$0xff]
    %v19 = vld [vmem:[%s0 + $0x8] sm:$0xff]
    %v20 = vld [vmem:[%s0 + $0x10] sm:$0xff]
    %v21 = vld [vmem:[%s0 + $0x18] sm:$0xff]
    %v22 = vld [vmem:[%s1] sm:$0xff]
    %v23 = vld [vmem:[%s1 + $0x8] sm:$0xff]
    %v24 = vld [vmem:[%s1 + $0x10] sm:$0xff]
    %v25 = vld [vmem:[%s1 + $0x18] sm:$0xff]
    %v26 = vlaneseq
    %v27 = vand.u32 %v26, 127
    %28 = vset.pattern.permute.xlu0 0
    %29 = vperm.xlu0 %28, %v18
    %v30 = vpop.permute.xlu0 %29
    %31 = vset.pattern.permute.xlu0 0
    %32 = vperm.xlu0 %31, %v19
    %v33 = vpop.permute.xlu0 %32
    %34 = vset.pattern.permute.xlu0 0
    %35 = vperm.xlu0 %34, %v20
    %v36 = vpop.permute.xlu0 %35
    %37 = vset.pattern.permute.xlu0 0
    %38 = vperm.xlu0 %37, %v21
    %v39 = vpop.permute.xlu0 %38
    %vm40 = vcmp.eq.s32.totalorder %v27, %v30
    %vm41 = vcmp.eq.s32.totalorder %v27, %v33
    %vm42 = vcmp.eq.s32.totalorder %v27, %v36
    %vm43 = vcmp.eq.s32.totalorder %v27, %v39
    %v44 = vsel %vm40, 1, 0
    %v45 = vsel %vm41, 1, 0
    %v46 = vsel %vm42, 1, 0
    %v47 = vsel %vm43, 1, 0
    %v48 = vcvt.s32.f32 %v44
    %v49 = vcvt.s32.f32 %v45
    %v50 = vcvt.s32.f32 %v46
    %v51 = vcvt.s32.f32 %v47
    %52 = vset.pattern.permute.xlu0 0
    %53 = vperm.xlu0 %52, %v22
    %v54 = vpop.permute.xlu0 %53
    %55 = vset.pattern.permute.xlu0 0
    %56 = vperm.xlu0 %55, %v23
    %v57 = vpop.permute.xlu0 %56
    %58 = vset.pattern.permute.xlu0 0
    %59 = vperm.xlu0 %58, %v24
    %v60 = vpop.permute.xlu0 %59
    %61 = vset.pattern.permute.xlu0 0
    %62 = vperm.xlu0 %61, %v25
    %v63 = vpop.permute.xlu0 %62
    %vm64 = vcmp.eq.s32.totalorder %v27, %v54
    %vm65 = vcmp.eq.s32.totalorder %v27, %v57
    %vm66 = vcmp.eq.s32.totalorder %v27, %v60
    %vm67 = vcmp.eq.s32.totalorder %v27, %v63
    %v68 = vsel %vm64, 1, 0
    %v69 = vsel %vm65, 1, 0
    %v70 = vsel %vm66, 1, 0
    %v71 = vsel %vm67, 1, 0
    %v72 = vcvt.s32.f32 %v68
    %v73 = vcvt.s32.f32 %v69
    %v74 = vcvt.s32.f32 %v70
    %v75 = vcvt.s32.f32 %v71
    %v76 = vld [vmem:[%s2] sm:$0xff]
    %v77 = vld [vmem:[%s2 + $0x8] sm:$0xff]
    %v78 = vld [vmem:[%s2 + $0x10] sm:$0xff]
    %v79 = vld [vmem:[%s2 + $0x18] sm:$0xff]
    %v80 = vld [vmem:[%s2 + $0x20] sm:$0xff]
    %v81 = vld [vmem:[%s2 + $0x28] sm:$0xff]
    %v82 = vld [vmem:[%s2 + $0x30] sm:$0xff]
    %v83 = vld [vmem:[%s2 + $0x38] sm:$0xff]
    %v84 = vld [vmem:[%s3] sm:$0xff]
    %vm85 = vcmask 64512
    %v87 = vsel %vm85, %v72, 0
    %v90 = vsel %vm85, %v73, 0
    %v93 = vsel %vm85, %v74, 0
    %v96 = vsel %vm85, %v75, 0
    %98 = vmatprep.subr.mxu0 0.0
    %v99 = vand.u32 %v84, 4294901760
    %100 = vmatpush1.msra.mxu0 %v99
    %101 = vmatprep.subr.mxu0 0.0
    %102 = vmatpush1.msra.mxu0 0.0
    %103 = vmatprep.subr.mxu0 0.0
    %104 = vmatpush1.msra.mxu0 0.0
    %105 = vmatprep.subr.mxu0 0.0
    %106 = vmatpush1.msra.mxu0 0.0
    %107 = vmatprep.subr.mxu0 0.0
    %108 = vmatpush1.msra.mxu0 0.0
    %109 = vmatprep.subr.mxu0 0.0
    %110 = vmatpush1.msra.mxu0 0.0
    %111 = vmatprep.subr.mxu0 0.0
    %112 = vmatpush1.msra.mxu0 0.0
    %113 = vmatprep.subr.mxu0 0.0
    %114 = vmatpush1.msra.mxu0 0.0
    %115 = vmatprep.subr.mxu0 0.0
    %116 = vmatpush1.msra.mxu0 0.0
    %117 = vmatprep.subr.mxu0 0.0
    %118 = vmatpush1.msra.mxu0 0.0
    %119 = vmatprep.subr.mxu0 0.0
    %120 = vmatpush1.msra.mxu0 0.0
    %121 = vmatprep.subr.mxu0 0.0
    %122 = vmatpush1.msra.mxu0 0.0
    %123 = vmatprep.subr.mxu0 0.0
    %124 = vmatpush1.msra.mxu0 0.0
    %125 = vmatprep.subr.mxu0 0.0
    %126 = vmatpush1.msra.mxu0 0.0
    %127 = vmatprep.subr.mxu0 0.0
    %128 = vmatpush1.msra.mxu0 0.0
    %129 = vmatprep.subr.mxu0 0.0
    %130 = vmatpush1.msra.mxu0 0.0
    %131 = vmatprep.subr.mxu0 0.0
    %132 = vmatpush1.msra.mxu0 0.0
    %133 = vmatprep.subr.mxu0 0.0
    %134 = vmatpush1.msra.mxu0 0.0
    %135 = vmatprep.subr.mxu0 0.0
    %136 = vmatpush1.msra.mxu0 0.0
    %137 = vmatprep.subr.mxu0 0.0
    %138 = vmatpush1.msra.mxu0 0.0
    %139 = vmatprep.subr.mxu0 0.0
    %140 = vmatpush1.msra.mxu0 0.0
    %141 = vmatprep.subr.mxu0 0.0
    %142 = vmatpush1.msra.mxu0 0.0
    %143 = vmatprep.subr.mxu0 0.0
    %144 = vmatpush1.msra.mxu0 0.0
    %145 = vmatprep.subr.mxu0 0.0
    %146 = vmatpush1.msra.mxu0 0.0
    %147 = vmatprep.subr.mxu0 0.0
    %148 = vmatpush1.msra.mxu0 0.0
    %149 = vmatprep.subr.mxu0 0.0
    %150 = vmatpush1.msra.mxu0 0.0
    %151 = vmatprep.subr.mxu0 0.0
    %152 = vmatpush1.msra.mxu0 0.0
    %153 = vmatprep.subr.mxu0 0.0
    %154 = vmatpush1.msra.mxu0 0.0
    %155 = vmatprep.subr.mxu0 0.0
    %156 = vmatpush1.msra.mxu0 0.0
    %157 = vmatprep.subr.mxu0 0.0
    %158 = vmatpush1.msra.mxu0 0.0
    %159 = vmatprep.subr.mxu0 0.0
    %160 = vmatpush1.msra.mxu0 0.0
    %161 = vmatprep.subr.mxu0 0.0
    %162 = vmatpush1.msra.mxu0 0.0
    %163 = vmatprep.mubr.f32.mxu0 0.0
    %v164 = vand.u32 %v87, 4294901760
    %v165 = vsub.f32 %v87, %v164
    %v166 = vand.u32 %v165, 4294901760
    %v167 = vsub.f32 %v165, %v166
    %v168 = vand.u32 %v167, 4294901760
    %169 = vmatmul.mubr.f32.gmra.mrb[0].mxu0 %v168
    %v170 = vpop.f32.mrb[0].mxu0
    %v171 = vadd.f32 0.0, %v170
    %v172 = vpop.f32.mrb[0].mxu0
    %173 = vmatprep.mubr.f32.mxu0 0.0
    %v174 = vand.u32 %v90, 4294901760
    %v175 = vsub.f32 %v90, %v174
    %v176 = vand.u32 %v175, 4294901760
    %v177 = vsub.f32 %v175, %v176
    %v178 = vand.u32 %v177, 4294901760
    %179 = vmatmul.mubr.f32.gmra.mrb[0].mxu0 %v178
    %v180 = vpop.f32.mrb[0].mxu0
    %v181 = vadd.f32 0.0, %v180
    %v182 = vpop.f32.mrb[0].mxu0
    %183 = vmatprep.mubr.f32.mxu0 0.0
    %v184 = vand.u32 %v93, 4294901760
    %v185 = vsub.f32 %v93, %v184
    %v186 = vand.u32 %v185, 4294901760
    %v187 = vsub.f32 %v185, %v186
    %v188 = vand.u32 %v187, 4294901760
    %189 = vmatmul.mubr.f32.gmra.mrb[0].mxu0 %v188
    %v190 = vpop.f32.mrb[0].mxu0
    %v191 = vadd.f32 0.0, %v190
    %v192 = vpop.f32.mrb[0].mxu0
    %193 = vmatprep.mubr.f32.mxu0 0.0
    %v194 = vand.u32 %v96, 4294901760
    %v195 = vsub.f32 %v96, %v194
    %v196 = vand.u32 %v195, 4294901760
    %v197 = vsub.f32 %v195, %v196
    %v198 = vand.u32 %v197, 4294901760
    %199 = vmatmul.mubr.f32.gmra.mrb[0].mxu0 %v198
    %v200 = vpop.f32.mrb[0].mxu0
    %v201 = vadd.f32 0.0, %v200
    %v202 = vpop.f32.mrb[0].mxu0
    %203 = vdwg.mxu0
    %204 = vmatprep.subr.mxu0 0.0
    %v205 = vand.u32 %v84, 4294901760
    %v206 = vsub.f32 %v84, %v205
    %v207 = vand.u32 %v206, 4294901760
    %v208 = vsub.f32 %v206, %v207
    %v209 = vand.u32 %v208, 4294901760
    %210 = vmatpush1.msra.mxu0 %v209
    %211 = vmatprep.subr.mxu0 0.0
    %212 = vmatpush1.msra.mxu0 0.0
    %213 = vmatprep.subr.mxu0 0.0
    %214 = vmatpush1.msra.mxu0 0.0
    %215 = vmatprep.subr.mxu0 0.0
    %216 = vmatpush1.msra.mxu0 0.0
    %217 = vmatprep.subr.mxu0 0.0
    %218 = vmatpush1.msra.mxu0 0.0
    %219 = vmatprep.subr.mxu0 0.0
    %220 = vmatpush1.msra.mxu0 0.0
    %221 = vmatprep.subr.mxu0 0.0
    %222 = vmatpush1.msra.mxu0 0.0
    %223 = vmatprep.subr.mxu0 0.0
    %224 = vmatpush1.msra.mxu0 0.0
    %225 = vmatprep.subr.mxu0 0.0
    %226 = vmatpush1.msra.mxu0 0.0
    %227 = vmatprep.subr.mxu0 0.0
    %228 = vmatpush1.msra.mxu0 0.0
    %229 = vmatprep.subr.mxu0 0.0
    %230 = vmatpush1.msra.mxu0 0.0
    %231 = vmatprep.subr.mxu0 0.0
    %232 = vmatpush1.msra.mxu0 0.0
    %233 = vmatprep.subr.mxu0 0.0
    %234 = vmatpush1.msra.mxu0 0.0
    %235 = vmatprep.subr.mxu0 0.0
    %236 = vmatpush1.msra.mxu0 0.0
    %237 = vmatprep.subr.mxu0 0.0
    %238 = vmatpush1.msra.mxu0 0.0
    %239 = vmatprep.subr.mxu0 0.0
    %240 = vmatpush1.msra.mxu0 0.0
    %241 = vmatprep.subr.mxu0 0.0
    %242 = vmatpush1.msra.mxu0 0.0
    %243 = vmatprep.subr.mxu0 0.0
    %244 = vmatpush1.msra.mxu0 0.0
    %245 = vmatprep.subr.mxu0 0.0
    %246 = vmatpush1.msra.mxu0 0.0
    %247 = vmatprep.subr.mxu0 0.0
    %248 = vmatpush1.msra.mxu0 0.0
    %249 = vmatprep.subr.mxu0 0.0
    %250 = vmatpush1.msra.mxu0 0.0
    %251 = vmatprep.subr.mxu0 0.0
    %252 = vmatpush1.msra.mxu0 0.0
    %253 = vmatprep.subr.mxu0 0.0
    %254 = vmatpush1.msra.mxu0 0.0
    %255 = vmatprep.subr.mxu0 0.0
    %256 = vmatpush1.msra.mxu0 0.0
    %257 = vmatprep.subr.mxu0 0.0
    %258 = vmatpush1.msra.mxu0 0.0
    %259 = vmatprep.subr.mxu0 0.0
    %260 = vmatpush1.msra.mxu0 0.0
    %261 = vmatprep.subr.mxu0 0.0
    %262 = vmatpush1.msra.mxu0 0.0
    %263 = vmatprep.subr.mxu0 0.0
    %264 = vmatpush1.msra.mxu0 0.0
    %265 = vmatprep.subr.mxu0 0.0
    %266 = vmatpush1.msra.mxu0 0.0
    %267 = vmatprep.subr.mxu0 0.0
    %268 = vmatpush1.msra.mxu0 0.0
    %269 = vmatprep.subr.mxu0 0.0
    %270 = vmatpush1.msra.mxu0 0.0
    %271 = vmatprep.subr.mxu0 0.0
    %272 = vmatpush1.msra.mxu0 0.0
    %273 = vmatprep.mubr.f32.mxu0 0.0
    %v274 = vand.u32 %v87, 4294901760
    %275 = vmatmul.mubr.f32.gmra.mrb[0].mxu0 %v274
    %v276 = vpop.f32.mrb[0].mxu0
    %v277 = vadd.f32 %v171, %v276
    %v278 = vpop.f32.mrb[0].mxu0
    %279 = vmatprep.mubr.f32.mxu0 0.0
    %v280 = vand.u32 %v90, 4294901760
    %281 = vmatmul.mubr.f32.gmra.mrb[0].mxu0 %v280
    %v282 = vpop.f32.mrb[0].mxu0
    %v283 = vadd.f32 %v181, %v282
    %v284 = vpop.f32.mrb[0].mxu0
    %285 = vmatprep.mubr.f32.mxu0 0.0
    %v286 = vand.u32 %v93, 4294901760
    %287 = vmatmul.mubr.f32.gmra.mrb[0].mxu0 %v286
    %v288 = vpop.f32.mrb[0].mxu0
    %v289 = vadd.f32 %v191, %v288
    %v290 = vpop.f32.mrb[0].mxu0
    %291 = vmatprep.mubr.f32.mxu0 0.0
    %v292 = vand.u32 %v96, 4294901760
    %293 = vmatmul.mubr.f32.gmra.mrb[0].mxu0 %v292
    %v294 = vpop.f32.mrb[0].mxu0
    %v295 = vadd.f32 %v201, %v294
    %v296 = vpop.f32.mrb[0].mxu0
    %297 = vdwg.mxu0
    %298 = vmatprep.subr.mxu0 0.0
    %v299 = vand.u32 %v84, 4294901760
    %v300 = vsub.f32 %v84, %v299
    %301 = vmatpush1.msra.mxu0 %v300
    %302 = vmatprep.subr.mxu0 0.0
    %303 = vmatpush1.msra.mxu0 0.0
    %304 = vmatprep.subr.mxu0 0.0
    %305 = vmatpush1.msra.mxu0 0.0
    %306 = vmatprep.subr.mxu0 0.0
    %307 = vmatpush1.msra.mxu0 0.0
    %308 = vmatprep.subr.mxu0 0.0
    %309 = vmatpush1.msra.mxu0 0.0
    %310 = vmatprep.subr.mxu0 0.0
    %311 = vmatpush1.msra.mxu0 0.0
    %312 = vmatprep.subr.mxu0 0.0
    %313 = vmatpush1.msra.mxu0 0.0
    %314 = vmatprep.subr.mxu0 0.0
    %315 = vmatpush1.msra.mxu0 0.0
    %316 = vmatprep.subr.mxu0 0.0
    %317 = vmatpush1.msra.mxu0 0.0
    %318 = vmatprep.subr.mxu0 0.0
    %319 = vmatpush1.msra.mxu0 0.0
    %320 = vmatprep.subr.mxu0 0.0
    %321 = vmatpush1.msra.mxu0 0.0
    %322 = vmatprep.subr.mxu0 0.0
    %323 = vmatpush1.msra.mxu0 0.0
    %324 = vmatprep.subr.mxu0 0.0
    %325 = vmatpush1.msra.mxu0 0.0
    %326 = vmatprep.subr.mxu0 0.0
    %327 = vmatpush1.msra.mxu0 0.0
    %328 = vmatprep.subr.mxu0 0.0
    %329 = vmatpush1.msra.mxu0 0.0
    %330 = vmatprep.subr.mxu0 0.0
    %331 = vmatpush1.msra.mxu0 0.0
    %332 = vmatprep.subr.mxu0 0.0
    %333 = vmatpush1.msra.mxu0 0.0
    %334 = vmatprep.subr.mxu0 0.0
    %335 = vmatpush1.msra.mxu0 0.0
    %336 = vmatprep.subr.mxu0 0.0
    %337 = vmatpush1.msra.mxu0 0.0
    %338 = vmatprep.subr.mxu0 0.0
    %339 = vmatpush1.msra.mxu0 0.0
    %340 = vmatprep.subr.mxu0 0.0
    %341 = vmatpush1.msra.mxu0 0.0
    %342 = vmatprep.subr.mxu0 0.0
    %343 = vmatpush1.msra.mxu0 0.0
    %344 = vmatprep.subr.mxu0 0.0
    %345 = vmatpush1.msra.mxu0 0.0
    %346 = vmatprep.subr.mxu0 0.0
    %347 = vmatpush1.msra.mxu0 0.0
    %348 = vmatprep.subr.mxu0 0.0
    %349 = vmatpush1.msra.mxu0 0.0
    %350 = vmatprep.subr.mxu0 0.0
    %351 = vmatpush1.msra.mxu0 0.0
    %352 = vmatprep.subr.mxu0 0.0
    %353 = vmatpush1.msra.mxu0 0.0
    %354 = vmatprep.subr.mxu0 0.0
    %355 = vmatpush1.msra.mxu0 0.0
    %356 = vmatprep.subr.mxu0 0.0
    %357 = vmatpush1.msra.mxu0 0.0
    %358 = vmatprep.subr.mxu0 0.0
    %359 = vmatpush1.msra.mxu0 0.0
    %360 = vmatprep.subr.mxu0 0.0
    %361 = vmatpush1.msra.mxu0 0.0
    %362 = vmatprep.subr.mxu0 0.0
    %363 = vmatpush1.msra.mxu0 0.0
    %364 = vmatprep.mubr.f32.mxu0 0.0
    %v365 = vand.u32 %v87, 4294901760
    %v366 = vsub.f32 %v87, %v365
    %367 = vmatmul.mubr.f32.gmra.mrb[0].mxu0 %v366
    %v368 = vpop.f32.mrb[0].mxu0
    %v369 = vadd.f32 %v277, %v368
    %v370 = vpop.f32.mrb[0].mxu0
    %371 = vmatprep.mubr.f32.mxu0 0.0
    %v372 = vand.u32 %v90, 4294901760
    %v373 = vsub.f32 %v90, %v372
    %374 = vmatmul.mubr.f32.gmra.mrb[0].mxu0 %v373
    %v375 = vpop.f32.mrb[0].mxu0
    %v376 = vadd.f32 %v283, %v375
    %v377 = vpop.f32.mrb[0].mxu0
    %378 = vmatprep.mubr.f32.mxu0 0.0
    %v379 = vand.u32 %v93, 4294901760
    %v380 = vsub.f32 %v93, %v379
    %381 = vmatmul.mubr.f32.gmra.mrb[0].mxu0 %v380
    %v382 = vpop.f32.mrb[0].mxu0
    %v383 = vadd.f32 %v289, %v382
    %v384 = vpop.f32.mrb[0].mxu0
    %385 = vmatprep.mubr.f32.mxu0 0.0
    %v386 = vand.u32 %v96, 4294901760
    %v387 = vsub.f32 %v96, %v386
    %388 = vmatmul.mubr.f32.gmra.mrb[0].mxu0 %v387
    %v389 = vpop.f32.mrb[0].mxu0
    %v390 = vadd.f32 %v295, %v389
    %v391 = vpop.f32.mrb[0].mxu0
    %392 = vdwg.mxu0
    %393 = vmatprep.subr.mxu0 0.0
    %v394 = vand.u32 %v84, 4294901760
    %395 = vmatpush1.msra.mxu0 %v394
    %396 = vmatprep.subr.mxu0 0.0
    %397 = vmatpush1.msra.mxu0 0.0
    %398 = vmatprep.subr.mxu0 0.0
    %399 = vmatpush1.msra.mxu0 0.0
    %400 = vmatprep.subr.mxu0 0.0
    %401 = vmatpush1.msra.mxu0 0.0
    %402 = vmatprep.subr.mxu0 0.0
    %403 = vmatpush1.msra.mxu0 0.0
    %404 = vmatprep.subr.mxu0 0.0
    %405 = vmatpush1.msra.mxu0 0.0
    %406 = vmatprep.subr.mxu0 0.0
    %407 = vmatpush1.msra.mxu0 0.0
    %408 = vmatprep.subr.mxu0 0.0
    %409 = vmatpush1.msra.mxu0 0.0
    %410 = vmatprep.subr.mxu0 0.0
    %411 = vmatpush1.msra.mxu0 0.0
    %412 = vmatprep.subr.mxu0 0.0
    %413 = vmatpush1.msra.mxu0 0.0
    %414 = vmatprep.subr.mxu0 0.0
    %415 = vmatpush1.msra.mxu0 0.0
    %416 = vmatprep.subr.mxu0 0.0
    %417 = vmatpush1.msra.mxu0 0.0
    %418 = vmatprep.subr.mxu0 0.0
    %419 = vmatpush1.msra.mxu0 0.0
    %420 = vmatprep.subr.mxu0 0.0
    %421 = vmatpush1.msra.mxu0 0.0
    %422 = vmatprep.subr.mxu0 0.0
    %423 = vmatpush1.msra.mxu0 0.0
    %424 = vmatprep.subr.mxu0 0.0
    %425 = vmatpush1.msra.mxu0 0.0
    %426 = vmatprep.subr.mxu0 0.0
    %427 = vmatpush1.msra.mxu0 0.0
    %428 = vmatprep.subr.mxu0 0.0
    %429 = vmatpush1.msra.mxu0 0.0
    %430 = vmatprep.subr.mxu0 0.0
    %431 = vmatpush1.msra.mxu0 0.0
    %432 = vmatprep.subr.mxu0 0.0
    %433 = vmatpush1.msra.mxu0 0.0
    %434 = vmatprep.subr.mxu0 0.0
    %435 = vmatpush1.msra.mxu0 0.0
    %436 = vmatprep.subr.mxu0 0.0
    %437 = vmatpush1.msra.mxu0 0.0
    %438 = vmatprep.subr.mxu0 0.0
    %439 = vmatpush1.msra.mxu0 0.0
    %440 = vmatprep.subr.mxu0 0.0
    %441 = vmatpush1.msra.mxu0 0.0
    %442 = vmatprep.subr.mxu0 0.0
    %443 = vmatpush1.msra.mxu0 0.0
    %444 = vmatprep.subr.mxu0 0.0
    %445 = vmatpush1.msra.mxu0 0.0
    %446 = vmatprep.subr.mxu0 0.0
    %447 = vmatpush1.msra.mxu0 0.0
    %448 = vmatprep.subr.mxu0 0.0
    %449 = vmatpush1.msra.mxu0 0.0
    %450 = vmatprep.subr.mxu0 0.0
    %451 = vmatpush1.msra.mxu0 0.0
    %452 = vmatprep.subr.mxu0 0.0
    %453 = vmatpush1.msra.mxu0 0.0
    %454 = vmatprep.subr.mxu0 0.0
    %455 = vmatpush1.msra.mxu0 0.0
    %456 = vmatprep.subr.mxu0 0.0
    %457 = vmatpush1.msra.mxu0 0.0
    %458 = vmatprep.mubr.f32.mxu0 0.0
    %v459 = vand.u32 %v87, 4294901760
    %v460 = vsub.f32 %v87, %v459
    %v461 = vand.u32 %v460, 4294901760
    %462 = vmatmul.mubr.f32.gmra.mrb[0].mxu0 %v461
    %v463 = vpop.f32.mrb[0].mxu0
    %v464 = vadd.f32 %v369, %v463
    %v465 = vpop.f32.mrb[0].mxu0
    %466 = vmatprep.mubr.f32.mxu0 0.0
    %v467 = vand.u32 %v90, 4294901760
    %v468 = vsub.f32 %v90, %v467
    %v469 = vand.u32 %v468, 4294901760
    %470 = vmatmul.mubr.f32.gmra.mrb[0].mxu0 %v469
    %v471 = vpop.f32.mrb[0].mxu0
    %v472 = vadd.f32 %v376, %v471
    %v473 = vpop.f32.mrb[0].mxu0
    %474 = vmatprep.mubr.f32.mxu0 0.0
    %v475 = vand.u32 %v93, 4294901760
    %v476 = vsub.f32 %v93, %v475
    %v477 = vand.u32 %v476, 4294901760
    %478 = vmatmul.mubr.f32.gmra.mrb[0].mxu0 %v477
    %v479 = vpop.f32.mrb[0].mxu0
    %v480 = vadd.f32 %v383, %v479
    %v481 = vpop.f32.mrb[0].mxu0
    %482 = vmatprep.mubr.f32.mxu0 0.0
    %v483 = vand.u32 %v96, 4294901760
    %v484 = vsub.f32 %v96, %v483
    %v485 = vand.u32 %v484, 4294901760
    %486 = vmatmul.mubr.f32.gmra.mrb[0].mxu0 %v485
    %v487 = vpop.f32.mrb[0].mxu0
    %v488 = vadd.f32 %v390, %v487
    %v489 = vpop.f32.mrb[0].mxu0
    %490 = vdwg.mxu0
    %491 = vmatprep.subr.mxu0 0.0
    %v492 = vand.u32 %v84, 4294901760
    %v493 = vsub.f32 %v84, %v492
    %v494 = vand.u32 %v493, 4294901760
    %495 = vmatpush1.msra.mxu0 %v494
    %496 = vmatprep.subr.mxu0 0.0
    %497 = vmatpush1.msra.mxu0 0.0
    %498 = vmatprep.subr.mxu0 0.0
    %499 = vmatpush1.msra.mxu0 0.0
    %500 = vmatprep.subr.mxu0 0.0
    %501 = vmatpush1.msra.mxu0 0.0
    %502 = vmatprep.subr.mxu0 0.0
    %503 = vmatpush1.msra.mxu0 0.0
    %504 = vmatprep.subr.mxu0 0.0
    %505 = vmatpush1.msra.mxu0 0.0
    %506 = vmatprep.subr.mxu0 0.0
    %507 = vmatpush1.msra.mxu0 0.0
    %508 = vmatprep.subr.mxu0 0.0
    %509 = vmatpush1.msra.mxu0 0.0
    %510 = vmatprep.subr.mxu0 0.0
    %511 = vmatpush1.msra.mxu0 0.0
    %512 = vmatprep.subr.mxu0 0.0
    %513 = vmatpush1.msra.mxu0 0.0
    %514 = vmatprep.subr.mxu0 0.0
    %515 = vmatpush1.msra.mxu0 0.0
    %516 = vmatprep.subr.mxu0 0.0
    %517 = vmatpush1.msra.mxu0 0.0
    %518 = vmatprep.subr.mxu0 0.0
    %519 = vmatpush1.msra.mxu0 0.0
    %520 = vmatprep.subr.mxu0 0.0
    %521 = vmatpush1.msra.mxu0 0.0
    %522 = vmatprep.subr.mxu0 0.0
    %523 = vmatpush1.msra.mxu0 0.0
    %524 = vmatprep.subr.mxu0 0.0
    %525 = vmatpush1.msra.mxu0 0.0
    %526 = vmatprep.subr.mxu0 0.0
    %527 = vmatpush1.msra.mxu0 0.0
    %528 = vmatprep.subr.mxu0 0.0
    %529 = vmatpush1.msra.mxu0 0.0
    %530 = vmatprep.subr.mxu0 0.0
    %531 = vmatpush1.msra.mxu0 0.0
    %532 = vmatprep.subr.mxu0 0.0
    %533 = vmatpush1.msra.mxu0 0.0
    %534 = vmatprep.subr.mxu0 0.0
    %535 = vmatpush1.msra.mxu0 0.0
    %536 = vmatprep.subr.mxu0 0.0
    %537 = vmatpush1.msra.mxu0 0.0
    %538 = vmatprep.subr.mxu0 0.0
    %539 = vmatpush1.msra.mxu0 0.0
    %540 = vmatprep.subr.mxu0 0.0
    %541 = vmatpush1.msra.mxu0 0.0
    %542 = vmatprep.subr.mxu0 0.0
    %543 = vmatpush1.msra.mxu0 0.0
    %544 = vmatprep.subr.mxu0 0.0
    %545 = vmatpush1.msra.mxu0 0.0
    %546 = vmatprep.subr.mxu0 0.0
    %547 = vmatpush1.msra.mxu0 0.0
    %548 = vmatprep.subr.mxu0 0.0
    %549 = vmatpush1.msra.mxu0 0.0
    %550 = vmatprep.subr.mxu0 0.0
    %551 = vmatpush1.msra.mxu0 0.0
    %552 = vmatprep.subr.mxu0 0.0
    %553 = vmatpush1.msra.mxu0 0.0
    %554 = vmatprep.subr.mxu0 0.0
    %555 = vmatpush1.msra.mxu0 0.0
    %556 = vmatprep.subr.mxu0 0.0
    %557 = vmatpush1.msra.mxu0 0.0
    %558 = vmatprep.mubr.f32.mxu0 0.0
    %v559 = vand.u32 %v87, 4294901760
    %560 = vmatmul.mubr.f32.gmra.mrb[0].mxu0 %v559
    %v561 = vpop.f32.mrb[0].mxu0
    %v562 = vadd.f32 %v464, %v561
    %v563 = vpop.f32.mrb[0].mxu0
    %564 = vmatprep.mubr.f32.mxu0 0.0
    %v565 = vand.u32 %v90, 4294901760
    %566 = vmatmul.mubr.f32.gmra.mrb[0].mxu0 %v565
    %v567 = vpop.f32.mrb[0].mxu0
    %v568 = vadd.f32 %v472, %v567
    %v569 = vpop.f32.mrb[0].mxu0
    %570 = vmatprep.mubr.f32.mxu0 0.0
    %v571 = vand.u32 %v93, 4294901760
    %572 = vmatmul.mubr.f32.gmra.mrb[0].mxu0 %v571
    %v573 = vpop.f32.mrb[0].mxu0
    %v574 = vadd.f32 %v480, %v573
    %v575 = vpop.f32.mrb[0].mxu0
    %576 = vmatprep.mubr.f32.mxu0 0.0
    %v577 = vand.u32 %v96, 4294901760
    %578 = vmatmul.mubr.f32.gmra.mrb[0].mxu0 %v577
    %v579 = vpop.f32.mrb[0].mxu0
    %v580 = vadd.f32 %v488, %v579
    %v581 = vpop.f32.mrb[0].mxu0
    %582 = vdwg.mxu0
    %583 = vmatprep.subr.mxu0 0.0
    %v584 = vand.u32 %v84, 4294901760
    %585 = vmatpush1.msra.mxu0 %v584
    %586 = vmatprep.subr.mxu0 0.0
    %587 = vmatpush1.msra.mxu0 0.0
    %588 = vmatprep.subr.mxu0 0.0
    %589 = vmatpush1.msra.mxu0 0.0
    %590 = vmatprep.subr.mxu0 0.0
    %591 = vmatpush1.msra.mxu0 0.0
    %592 = vmatprep.subr.mxu0 0.0
    %593 = vmatpush1.msra.mxu0 0.0
    %594 = vmatprep.subr.mxu0 0.0
    %595 = vmatpush1.msra.mxu0 0.0
    %596 = vmatprep.subr.mxu0 0.0
    %597 = vmatpush1.msra.mxu0 0.0
    %598 = vmatprep.subr.mxu0 0.0
    %599 = vmatpush1.msra.mxu0 0.0
    %600 = vmatprep.subr.mxu0 0.0
    %601 = vmatpush1.msra.mxu0 0.0
    %602 = vmatprep.subr.mxu0 0.0
    %603 = vmatpush1.msra.mxu0 0.0
    %604 = vmatprep.subr.mxu0 0.0
    %605 = vmatpush1.msra.mxu0 0.0
    %606 = vmatprep.subr.mxu0 0.0
    %607 = vmatpush1.msra.mxu0 0.0
    %608 = vmatprep.subr.mxu0 0.0
    %609 = vmatpush1.msra.mxu0 0.0
    %610 = vmatprep.subr.mxu0 0.0
    %611 = vmatpush1.msra.mxu0 0.0
    %612 = vmatprep.subr.mxu0 0.0
    %613 = vmatpush1.msra.mxu0 0.0
    %614 = vmatprep.subr.mxu0 0.0
    %615 = vmatpush1.msra.mxu0 0.0
    %616 = vmatprep.subr.mxu0 0.0
    %617 = vmatpush1.msra.mxu0 0.0
    %618 = vmatprep.subr.mxu0 0.0
    %619 = vmatpush1.msra.mxu0 0.0
    %620 = vmatprep.subr.mxu0 0.0
    %621 = vmatpush1.msra.mxu0 0.0
    %622 = vmatprep.subr.mxu0 0.0
    %623 = vmatpush1.msra.mxu0 0.0
    %624 = vmatprep.subr.mxu0 0.0
    %625 = vmatpush1.msra.mxu0 0.0
    %626 = vmatprep.subr.mxu0 0.0
    %627 = vmatpush1.msra.mxu0 0.0
    %628 = vmatprep.subr.mxu0 0.0
    %629 = vmatpush1.msra.mxu0 0.0
    %630 = vmatprep.subr.mxu0 0.0
    %631 = vmatpush1.msra.mxu0 0.0
    %632 = vmatprep.subr.mxu0 0.0
    %633 = vmatpush1.msra.mxu0 0.0
    %634 = vmatprep.subr.mxu0 0.0
    %635 = vmatpush1.msra.mxu0 0.0
    %636 = vmatprep.subr.mxu0 0.0
    %637 = vmatpush1.msra.mxu0 0.0
    %638 = vmatprep.subr.mxu0 0.0
    %639 = vmatpush1.msra.mxu0 0.0
    %640 = vmatprep.subr.mxu0 0.0
    %641 = vmatpush1.msra.mxu0 0.0
    %642 = vmatprep.subr.mxu0 0.0
    %643 = vmatpush1.msra.mxu0 0.0
    %644 = vmatprep.subr.mxu0 0.0
    %645 = vmatpush1.msra.mxu0 0.0
    %646 = vmatprep.subr.mxu0 0.0
    %647 = vmatpush1.msra.mxu0 0.0
    %648 = vmatprep.mubr.f32.mxu0 0.0
    %v649 = vand.u32 %v87, 4294901760
    %650 = vmatmul.mubr.f32.gmra.mrb[0].mxu0 %v649
    %v651 = vpop.f32.mrb[0].mxu0
    %v652 = vadd.f32 %v562, %v651
    %v653 = vpop.f32.mrb[0].mxu0
    %654 = vmatprep.mubr.f32.mxu0 0.0
    %v655 = vand.u32 %v90, 4294901760
    %656 = vmatmul.mubr.f32.gmra.mrb[0].mxu0 %v655
    %v657 = vpop.f32.mrb[0].mxu0
    %v658 = vadd.f32 %v568, %v657
    %v659 = vpop.f32.mrb[0].mxu0
    %660 = vmatprep.mubr.f32.mxu0 0.0
    %v661 = vand.u32 %v93, 4294901760
    %662 = vmatmul.mubr.f32.gmra.mrb[0].mxu0 %v661
    %v663 = vpop.f32.mrb[0].mxu0
    %v664 = vadd.f32 %v574, %v663
    %v665 = vpop.f32.mrb[0].mxu0
    %666 = vmatprep.mubr.f32.mxu0 0.0
    %v667 = vand.u32 %v96, 4294901760
    %668 = vmatmul.mubr.f32.gmra.mrb[0].mxu0 %v667
    %v669 = vpop.f32.mrb[0].mxu0
    %v670 = vadd.f32 %v580, %v669
    %v671 = vpop.f32.mrb[0].mxu0
    %672 = vdwg.mxu0
    %vm673 = vcmask 523264
    %v675 = vsel %vm673, %v48, 0
    %v678 = vsel %vm673, %v49, 0
    %v681 = vsel %vm673, %v50, 0
    %v684 = vsel %vm673, %v51, 0
    %686 = vmatprep.subr.mxu0 0.0
    %v687 = vand.u32 %v76, 4294901760
    %688 = vmatpush1.msra.mxu0 %v687
    %689 = vmatprep.subr.mxu0 0.0
    %v690 = vand.u32 %v77, 4294901760
    %691 = vmatpush1.msra.mxu0 %v690
    %692 = vmatprep.subr.mxu0 0.0
    %v693 = vand.u32 %v78, 4294901760
    %694 = vmatpush1.msra.mxu0 %v693
    %695 = vmatprep.subr.mxu0 0.0
    %v696 = vand.u32 %v79, 4294901760
    %697 = vmatpush1.msra.mxu0 %v696
    %698 = vmatprep.subr.mxu0 0.0
    %v699 = vand.u32 %v80, 4294901760
    %700 = vmatpush1.msra.mxu0 %v699
    %701 = vmatprep.subr.mxu0 0.0
    %v702 = vand.u32 %v81, 4294901760
    %703 = vmatpush1.msra.mxu0 %v702
    %704 = vmatprep.subr.mxu0 0.0
    %v705 = vand.u32 %v82, 4294901760
    %706 = vmatpush1.msra.mxu0 %v705
    %707 = vmatprep.subr.mxu0 0.0
    %v708 = vand.u32 %v83, 4294901760
    %709 = vmatpush1.msra.mxu0 %v708
    %710 = vmatprep.subr.mxu0 0.0
    %711 = vmatpush1.msra.mxu0 0.0
    %712 = vmatprep.subr.mxu0 0.0
    %713 = vmatpush1.msra.mxu0 0.0
    %714 = vmatprep.subr.mxu0 0.0
    %715 = vmatpush1.msra.mxu0 0.0
    %716 = vmatprep.subr.mxu0 0.0
    %717 = vmatpush1.msra.mxu0 0.0
    %718 = vmatprep.subr.mxu0 0.0
    %719 = vmatpush1.msra.mxu0 0.0
    %720 = vmatprep.subr.mxu0 0.0
    %721 = vmatpush1.msra.mxu0 0.0
    %722 = vmatprep.subr.mxu0 0.0
    %723 = vmatpush1.msra.mxu0 0.0
    %724 = vmatprep.subr.mxu0 0.0
    %725 = vmatpush1.msra.mxu0 0.0
    %726 = vmatprep.subr.mxu0 0.0
    %727 = vmatpush1.msra.mxu0 0.0
    %728 = vmatprep.subr.mxu0 0.0
    %729 = vmatpush1.msra.mxu0 0.0
    %730 = vmatprep.subr.mxu0 0.0
    %731 = vmatpush1.msra.mxu0 0.0
    %732 = vmatprep.subr.mxu0 0.0
    %733 = vmatpush1.msra.mxu0 0.0
    %734 = vmatprep.subr.mxu0 0.0
    %735 = vmatpush1.msra.mxu0 0.0
    %736 = vmatprep.subr.mxu0 0.0
    %737 = vmatpush1.msra.mxu0 0.0
    %738 = vmatprep.subr.mxu0 0.0
    %739 = vmatpush1.msra.mxu0 0.0
    %740 = vmatprep.subr.mxu0 0.0
    %741 = vmatpush1.msra.mxu0 0.0
    %742 = vmatprep.subr.mxu0 0.0
    %743 = vmatpush1.msra.mxu0 0.0
    %744 = vmatprep.subr.mxu0 0.0
    %745 = vmatpush1.msra.mxu0 0.0
    %746 = vmatprep.subr.mxu0 0.0
    %747 = vmatpush1.msra.mxu0 0.0
    %748 = vmatprep.subr.mxu0 0.0
    %749 = vmatpush1.msra.mxu0 0.0
    %750 = vmatprep.subr.mxu0 0.0
    %751 = vmatpush1.msra.mxu0 0.0
    %752 = vmatprep.subr.mxu0 0.0
    %753 = vmatpush1.msra.mxu0 0.0
    %754 = vmatprep.subr.mxu0 0.0
    %755 = vmatpush1.msra.mxu0 0.0
    %756 = vmatprep.subr.mxu0 0.0
    %757 = vmatpush1.msra.mxu0 0.0
    %758 = vmatprep.mubr.f32.mxu0 0.0
    %v759 = vand.u32 %v675, 4294901760
    %v760 = vsub.f32 %v675, %v759
    %v761 = vand.u32 %v760, 4294901760
    %v762 = vsub.f32 %v760, %v761
    %v763 = vand.u32 %v762, 4294901760
    %764 = vmatmul.mubr.f32.gmra.mrb[0].mxu0 %v763
    %v765 = vpop.f32.mrb[0].mxu0
    %v766 = vadd.f32 %v652, %v765
    %v767 = vpop.f32.mrb[0].mxu0
    %768 = vmatprep.mubr.f32.mxu0 0.0
    %v769 = vand.u32 %v678, 4294901760
    %v770 = vsub.f32 %v678, %v769
    %v771 = vand.u32 %v770, 4294901760
    %v772 = vsub.f32 %v770, %v771
    %v773 = vand.u32 %v772, 4294901760
    %774 = vmatmul.mubr.f32.gmra.mrb[0].mxu0 %v773
    %v775 = vpop.f32.mrb[0].mxu0
    %v776 = vadd.f32 %v658, %v775
    %v777 = vpop.f32.mrb[0].mxu0
    %778 = vmatprep.mubr.f32.mxu0 0.0
    %v779 = vand.u32 %v681, 4294901760
    %v780 = vsub.f32 %v681, %v779
    %v781 = vand.u32 %v780, 4294901760
    %v782 = vsub.f32 %v780, %v781
    %v783 = vand.u32 %v782, 4294901760
    %784 = vmatmul.mubr.f32.gmra.mrb[0].mxu0 %v783
    %v785 = vpop.f32.mrb[0].mxu0
    %v786 = vadd.f32 %v664, %v785
    %v787 = vpop.f32.mrb[0].mxu0
    %788 = vmatprep.mubr.f32.mxu0 0.0
    %v789 = vand.u32 %v684, 4294901760
    %v790 = vsub.f32 %v684, %v789
    %v791 = vand.u32 %v790, 4294901760
    %v792 = vsub.f32 %v790, %v791
    %v793 = vand.u32 %v792, 4294901760
    %794 = vmatmul.mubr.f32.gmra.mrb[0].mxu0 %v793
    %v795 = vpop.f32.mrb[0].mxu0
    %v796 = vadd.f32 %v670, %v795
    %v797 = vpop.f32.mrb[0].mxu0
    %798 = vdwg.mxu0
    %799 = vmatprep.subr.mxu0 0.0
    %v800 = vand.u32 %v76, 4294901760
    %v801 = vsub.f32 %v76, %v800
    %v802 = vand.u32 %v801, 4294901760
    %v803 = vsub.f32 %v801, %v802
    %v804 = vand.u32 %v803, 4294901760
    %805 = vmatpush1.msra.mxu0 %v804
    %806 = vmatprep.subr.mxu0 0.0
    %v807 = vand.u32 %v77, 4294901760
    %v808 = vsub.f32 %v77, %v807
    %v809 = vand.u32 %v808, 4294901760
    %v810 = vsub.f32 %v808, %v809
    %v811 = vand.u32 %v810, 4294901760
    %812 = vmatpush1.msra.mxu0 %v811
    %813 = vmatprep.subr.mxu0 0.0
    %v814 = vand.u32 %v78, 4294901760
    %v815 = vsub.f32 %v78, %v814
    %v816 = vand.u32 %v815, 4294901760
    %v817 = vsub.f32 %v815, %v816
    %v818 = vand.u32 %v817, 4294901760
    %819 = vmatpush1.msra.mxu0 %v818
    %820 = vmatprep.subr.mxu0 0.0
    %v821 = vand.u32 %v79, 4294901760
    %v822 = vsub.f32 %v79, %v821
    %v823 = vand.u32 %v822, 4294901760
    %v824 = vsub.f32 %v822, %v823
    %v825 = vand.u32 %v824, 4294901760
    %826 = vmatpush1.msra.mxu0 %v825
    %827 = vmatprep.subr.mxu0 0.0
    %v828 = vand.u32 %v80, 4294901760
    %v829 = vsub.f32 %v80, %v828
    %v830 = vand.u32 %v829, 4294901760
    %v831 = vsub.f32 %v829, %v830
    %v832 = vand.u32 %v831, 4294901760
    %833 = vmatpush1.msra.mxu0 %v832
    %834 = vmatprep.subr.mxu0 0.0
    %v835 = vand.u32 %v81, 4294901760
    %v836 = vsub.f32 %v81, %v835
    %v837 = vand.u32 %v836, 4294901760
    %v838 = vsub.f32 %v836, %v837
    %v839 = vand.u32 %v838, 4294901760
    %840 = vmatpush1.msra.mxu0 %v839
    %841 = vmatprep.subr.mxu0 0.0
    %v842 = vand.u32 %v82, 4294901760
    %v843 = vsub.f32 %v82, %v842
    %v844 = vand.u32 %v843, 4294901760
    %v845 = vsub.f32 %v843, %v844
    %v846 = vand.u32 %v845, 4294901760
    %847 = vmatpush1.msra.mxu0 %v846
    %848 = vmatprep.subr.mxu0 0.0
    %v849 = vand.u32 %v83, 4294901760
    %v850 = vsub.f32 %v83, %v849
    %v851 = vand.u32 %v850, 4294901760
    %v852 = vsub.f32 %v850, %v851
    %v853 = vand.u32 %v852, 4294901760
    %854 = vmatpush1.msra.mxu0 %v853
    %855 = vmatprep.subr.mxu0 0.0
    %856 = vmatpush1.msra.mxu0 0.0
    %857 = vmatprep.subr.mxu0 0.0
    %858 = vmatpush1.msra.mxu0 0.0
    %859 = vmatprep.subr.mxu0 0.0
    %860 = vmatpush1.msra.mxu0 0.0
    %861 = vmatprep.subr.mxu0 0.0
    %862 = vmatpush1.msra.mxu0 0.0
    %863 = vmatprep.subr.mxu0 0.0
    %864 = vmatpush1.msra.mxu0 0.0
    %865 = vmatprep.subr.mxu0 0.0
    %866 = vmatpush1.msra.mxu0 0.0
    %867 = vmatprep.subr.mxu0 0.0
    %868 = vmatpush1.msra.mxu0 0.0
    %869 = vmatprep.subr.mxu0 0.0
    %870 = vmatpush1.msra.mxu0 0.0
    %871 = vmatprep.subr.mxu0 0.0
    %872 = vmatpush1.msra.mxu0 0.0
    %873 = vmatprep.subr.mxu0 0.0
    %874 = vmatpush1.msra.mxu0 0.0
    %875 = vmatprep.subr.mxu0 0.0
    %876 = vmatpush1.msra.mxu0 0.0
    %877 = vmatprep.subr.mxu0 0.0
    %878 = vmatpush1.msra.mxu0 0.0
    %879 = vmatprep.subr.mxu0 0.0
    %880 = vmatpush1.msra.mxu0 0.0
    %881 = vmatprep.subr.mxu0 0.0
    %882 = vmatpush1.msra.mxu0 0.0
    %883 = vmatprep.subr.mxu0 0.0
    %884 = vmatpush1.msra.mxu0 0.0
    %885 = vmatprep.subr.mxu0 0.0
    %886 = vmatpush1.msra.mxu0 0.0
    %887 = vmatprep.subr.mxu0 0.0
    %888 = vmatpush1.msra.mxu0 0.0
    %889 = vmatprep.subr.mxu0 0.0
    %890 = vmatpush1.msra.mxu0 0.0
    %891 = vmatprep.subr.mxu0 0.0
    %892 = vmatpush1.msra.mxu0 0.0
    %893 = vmatprep.subr.mxu0 0.0
    %894 = vmatpush1.msra.mxu0 0.0
    %895 = vmatprep.subr.mxu0 0.0
    %896 = vmatpush1.msra.mxu0 0.0
    %897 = vmatprep.subr.mxu0 0.0
    %898 = vmatpush1.msra.mxu0 0.0
    %899 = vmatprep.subr.mxu0 0.0
    %900 = vmatpush1.msra.mxu0 0.0
    %901 = vmatprep.subr.mxu0 0.0
    %902 = vmatpush1.msra.mxu0 0.0
    %903 = vmatprep.mubr.f32.mxu0 0.0
    %v904 = vand.u32 %v675, 4294901760
    %905 = vmatmul.mubr.f32.gmra.mrb[0].mxu0 %v904
    %v906 = vpop.f32.mrb[0].mxu0
    %v907 = vadd.f32 %v766, %v906
    %v908 = vpop.f32.mrb[0].mxu0
    %909 = vmatprep.mubr.f32.mxu0 0.0
    %v910 = vand.u32 %v678, 4294901760
    %911 = vmatmul.mubr.f32.gmra.mrb[0].mxu0 %v910
    %v912 = vpop.f32.mrb[0].mxu0
    %v913 = vadd.f32 %v776, %v912
    %v914 = vpop.f32.mrb[0].mxu0
    %915 = vmatprep.mubr.f32.mxu0 0.0
    %v916 = vand.u32 %v681, 4294901760
    %917 = vmatmul.mubr.f32.gmra.mrb[0].mxu0 %v916
    %v918 = vpop.f32.mrb[0].mxu0
    %v919 = vadd.f32 %v786, %v918
    %v920 = vpop.f32.mrb[0].mxu0
    %921 = vmatprep.mubr.f32.mxu0 0.0
    %v922 = vand.u32 %v684, 4294901760
    %923 = vmatmul.mubr.f32.gmra.mrb[0].mxu0 %v922
    %v924 = vpop.f32.mrb[0].mxu0
    %v925 = vadd.f32 %v796, %v924
    %v926 = vpop.f32.mrb[0].mxu0
    %927 = vdwg.mxu0
    %928 = vmatprep.subr.mxu0 0.0
    %v929 = vand.u32 %v76, 4294901760
    %v930 = vsub.f32 %v76, %v929
    %931 = vmatpush1.msra.mxu0 %v930
    %932 = vmatprep.subr.mxu0 0.0
    %v933 = vand.u32 %v77, 4294901760
    %v934 = vsub.f32 %v77, %v933
    %935 = vmatpush1.msra.mxu0 %v934
    %936 = vmatprep.subr.mxu0 0.0
    %v937 = vand.u32 %v78, 4294901760
    %v938 = vsub.f32 %v78, %v937
    %939 = vmatpush1.msra.mxu0 %v938
    %940 = vmatprep.subr.mxu0 0.0
    %v941 = vand.u32 %v79, 4294901760
    %v942 = vsub.f32 %v79, %v941
    %943 = vmatpush1.msra.mxu0 %v942
    %944 = vmatprep.subr.mxu0 0.0
    %v945 = vand.u32 %v80, 4294901760
    %v946 = vsub.f32 %v80, %v945
    %947 = vmatpush1.msra.mxu0 %v946
    %948 = vmatprep.subr.mxu0 0.0
    %v949 = vand.u32 %v81, 4294901760
    %v950 = vsub.f32 %v81, %v949
    %951 = vmatpush1.msra.mxu0 %v950
    %952 = vmatprep.subr.mxu0 0.0
    %v953 = vand.u32 %v82, 4294901760
    %v954 = vsub.f32 %v82, %v953
    %955 = vmatpush1.msra.mxu0 %v954
    %956 = vmatprep.subr.mxu0 0.0
    %v957 = vand.u32 %v83, 4294901760
    %v958 = vsub.f32 %v83, %v957
    %959 = vmatpush1.msra.mxu0 %v958
    %960 = vmatprep.subr.mxu0 0.0
    %961 = vmatpush1.msra.mxu0 0.0
    %962 = vmatprep.subr.mxu0 0.0
    %963 = vmatpush1.msra.mxu0 0.0
    %964 = vmatprep.subr.mxu0 0.0
    %965 = vmatpush1.msra.mxu0 0.0
    %966 = vmatprep.subr.mxu0 0.0
    %967 = vmatpush1.msra.mxu0 0.0
    %968 = vmatprep.subr.mxu0 0.0
    %969 = vmatpush1.msra.mxu0 0.0
    %970 = vmatprep.subr.mxu0 0.0
    %971 = vmatpush1.msra.mxu0 0.0
    %972 = vmatprep.subr.mxu0 0.0
    %973 = vmatpush1.msra.mxu0 0.0
    %974 = vmatprep.subr.mxu0 0.0
    %975 = vmatpush1.msra.mxu0 0.0
    %976 = vmatprep.subr.mxu0 0.0
    %977 = vmatpush1.msra.mxu0 0.0
    %978 = vmatprep.subr.mxu0 0.0
    %979 = vmatpush1.msra.mxu0 0.0
    %980 = vmatprep.subr.mxu0 0.0
    %981 = vmatpush1.msra.mxu0 0.0
    %982 = vmatprep.subr.mxu0 0.0
    %983 = vmatpush1.msra.mxu0 0.0
    %984 = vmatprep.subr.mxu0 0.0
    %985 = vmatpush1.msra.mxu0 0.0
    %986 = vmatprep.subr.mxu0 0.0
    %987 = vmatpush1.msra.mxu0 0.0
    %988 = vmatprep.subr.mxu0 0.0
    %989 = vmatpush1.msra.mxu0 0.0
    %990 = vmatprep.subr.mxu0 0.0
    %991 = vmatpush1.msra.mxu0 0.0
    %992 = vmatprep.subr.mxu0 0.0
    %993 = vmatpush1.msra.mxu0 0.0
    %994 = vmatprep.subr.mxu0 0.0
    %995 = vmatpush1.msra.mxu0 0.0
    %996 = vmatprep.subr.mxu0 0.0
    %997 = vmatpush1.msra.mxu0 0.0
    %998 = vmatprep.subr.mxu0 0.0
    %999 = vmatpush1.msra.mxu0 0.0
    %1000 = vmatprep.subr.mxu0 0.0
    %1001 = vmatpush1.msra.mxu0 0.0
    %1002 = vmatprep.subr.mxu0 0.0
    %1003 = vmatpush1.msra.mxu0 0.0
    %1004 = vmatprep.subr.mxu0 0.0
    %1005 = vmatpush1.msra.mxu0 0.0
    %1006 = vmatprep.subr.mxu0 0.0
    %1007 = vmatpush1.msra.mxu0 0.0
    %1008 = vmatprep.mubr.f32.mxu0 0.0
    %v1009 = vand.u32 %v675, 4294901760
    %v1010 = vsub.f32 %v675, %v1009
    %1011 = vmatmul.mubr.f32.gmra.mrb[0].mxu0 %v1010
    %v1012 = vpop.f32.mrb[0].mxu0
    %v1013 = vadd.f32 %v907, %v1012
    %v1014 = vpop.f32.mrb[0].mxu0
    %1015 = vmatprep.mubr.f32.mxu0 0.0
    %v1016 = vand.u32 %v678, 4294901760
    %v1017 = vsub.f32 %v678, %v1016
    %1018 = vmatmul.mubr.f32.gmra.mrb[0].mxu0 %v1017
    %v1019 = vpop.f32.mrb[0].mxu0
    %v1020 = vadd.f32 %v913, %v1019
    %v1021 = vpop.f32.mrb[0].mxu0
    %1022 = vmatprep.mubr.f32.mxu0 0.0
    %v1023 = vand.u32 %v681, 4294901760
    %v1024 = vsub.f32 %v681, %v1023
    %1025 = vmatmul.mubr.f32.gmra.mrb[0].mxu0 %v1024
    %v1026 = vpop.f32.mrb[0].mxu0
    %v1027 = vadd.f32 %v919, %v1026
    %v1028 = vpop.f32.mrb[0].mxu0
    %1029 = vmatprep.mubr.f32.mxu0 0.0
    %v1030 = vand.u32 %v684, 4294901760
    %v1031 = vsub.f32 %v684, %v1030
    %1032 = vmatmul.mubr.f32.gmra.mrb[0].mxu0 %v1031
    %v1033 = vpop.f32.mrb[0].mxu0
    %v1034 = vadd.f32 %v925, %v1033
    %v1035 = vpop.f32.mrb[0].mxu0
    %1036 = vdwg.mxu0
    %1037 = vmatprep.subr.mxu0 0.0
    %v1038 = vand.u32 %v76, 4294901760
    %1039 = vmatpush1.msra.mxu0 %v1038
    %1040 = vmatprep.subr.mxu0 0.0
    %v1041 = vand.u32 %v77, 4294901760
    %1042 = vmatpush1.msra.mxu0 %v1041
    %1043 = vmatprep.subr.mxu0 0.0
    %v1044 = vand.u32 %v78, 4294901760
    %1045 = vmatpush1.msra.mxu0 %v1044
    %1046 = vmatprep.subr.mxu0 0.0
    %v1047 = vand.u32 %v79, 4294901760
    %1048 = vmatpush1.msra.mxu0 %v1047
    %1049 = vmatprep.subr.mxu0 0.0
    %v1050 = vand.u32 %v80, 4294901760
    %1051 = vmatpush1.msra.mxu0 %v1050
    %1052 = vmatprep.subr.mxu0 0.0
    %v1053 = vand.u32 %v81, 4294901760
    %1054 = vmatpush1.msra.mxu0 %v1053
    %1055 = vmatprep.subr.mxu0 0.0
    %v1056 = vand.u32 %v82, 4294901760
    %1057 = vmatpush1.msra.mxu0 %v1056
    %1058 = vmatprep.subr.mxu0 0.0
    %v1059 = vand.u32 %v83, 4294901760
    %1060 = vmatpush1.msra.mxu0 %v1059
    %1061 = vmatprep.subr.mxu0 0.0
    %1062 = vmatpush1.msra.mxu0 0.0
    %1063 = vmatprep.subr.mxu0 0.0
    %1064 = vmatpush1.msra.mxu0 0.0
    %1065 = vmatprep.subr.mxu0 0.0
    %1066 = vmatpush1.msra.mxu0 0.0
    %1067 = vmatprep.subr.mxu0 0.0
    %1068 = vmatpush1.msra.mxu0 0.0
    %1069 = vmatprep.subr.mxu0 0.0
    %1070 = vmatpush1.msra.mxu0 0.0
    %1071 = vmatprep.subr.mxu0 0.0
    %1072 = vmatpush1.msra.mxu0 0.0
    %1073 = vmatprep.subr.mxu0 0.0
    %1074 = vmatpush1.msra.mxu0 0.0
    %1075 = vmatprep.subr.mxu0 0.0
    %1076 = vmatpush1.msra.mxu0 0.0
    %1077 = vmatprep.subr.mxu0 0.0
    %1078 = vmatpush1.msra.mxu0 0.0
    %1079 = vmatprep.subr.mxu0 0.0
    %1080 = vmatpush1.msra.mxu0 0.0
    %1081 = vmatprep.subr.mxu0 0.0
    %1082 = vmatpush1.msra.mxu0 0.0
    %1083 = vmatprep.subr.mxu0 0.0
    %1084 = vmatpush1.msra.mxu0 0.0
    %1085 = vmatprep.subr.mxu0 0.0
    %1086 = vmatpush1.msra.mxu0 0.0
    %1087 = vmatprep.subr.mxu0 0.0
    %1088 = vmatpush1.msra.mxu0 0.0
    %1089 = vmatprep.subr.mxu0 0.0
    %1090 = vmatpush1.msra.mxu0 0.0
    %1091 = vmatprep.subr.mxu0 0.0
    %1092 = vmatpush1.msra.mxu0 0.0
    %1093 = vmatprep.subr.mxu0 0.0
    %1094 = vmatpush1.msra.mxu0 0.0
    %1095 = vmatprep.subr.mxu0 0.0
    %1096 = vmatpush1.msra.mxu0 0.0
    %1097 = vmatprep.subr.mxu0 0.0
    %1098 = vmatpush1.msra.mxu0 0.0
    %1099 = vmatprep.subr.mxu0 0.0
    %1100 = vmatpush1.msra.mxu0 0.0
    %1101 = vmatprep.subr.mxu0 0.0
    %1102 = vmatpush1.msra.mxu0 0.0
    %1103 = vmatprep.subr.mxu0 0.0
    %1104 = vmatpush1.msra.mxu0 0.0
    %1105 = vmatprep.subr.mxu0 0.0
    %1106 = vmatpush1.msra.mxu0 0.0
    %1107 = vmatprep.subr.mxu0 0.0
    %1108 = vmatpush1.msra.mxu0 0.0
    %1109 = vmatprep.mubr.f32.mxu0 0.0
    %v1110 = vand.u32 %v675, 4294901760
    %v1111 = vsub.f32 %v675, %v1110
    %v1112 = vand.u32 %v1111, 4294901760
    %1113 = vmatmul.mubr.f32.gmra.mrb[0].mxu0 %v1112
    %v1114 = vpop.f32.mrb[0].mxu0
    %v1115 = vadd.f32 %v1013, %v1114
    %v1116 = vpop.f32.mrb[0].mxu0
    %1117 = vmatprep.mubr.f32.mxu0 0.0
    %v1118 = vand.u32 %v678, 4294901760
    %v1119 = vsub.f32 %v678, %v1118
    %v1120 = vand.u32 %v1119, 4294901760
    %1121 = vmatmul.mubr.f32.gmra.mrb[0].mxu0 %v1120
    %v1122 = vpop.f32.mrb[0].mxu0
    %v1123 = vadd.f32 %v1020, %v1122
    %v1124 = vpop.f32.mrb[0].mxu0
    %1125 = vmatprep.mubr.f32.mxu0 0.0
    %v1126 = vand.u32 %v681, 4294901760
    %v1127 = vsub.f32 %v681, %v1126
    %v1128 = vand.u32 %v1127, 4294901760
    %1129 = vmatmul.mubr.f32.gmra.mrb[0].mxu0 %v1128
    %v1130 = vpop.f32.mrb[0].mxu0
    %v1131 = vadd.f32 %v1027, %v1130
    %v1132 = vpop.f32.mrb[0].mxu0
    %1133 = vmatprep.mubr.f32.mxu0 0.0
    %v1134 = vand.u32 %v684, 4294901760
    %v1135 = vsub.f32 %v684, %v1134
    %v1136 = vand.u32 %v1135, 4294901760
    %1137 = vmatmul.mubr.f32.gmra.mrb[0].mxu0 %v1136
    %v1138 = vpop.f32.mrb[0].mxu0
    %v1139 = vadd.f32 %v1034, %v1138
    %v1140 = vpop.f32.mrb[0].mxu0
    %1141 = vdwg.mxu0
    %1142 = vmatprep.subr.mxu0 0.0
    %v1143 = vand.u32 %v76, 4294901760
    %v1144 = vsub.f32 %v76, %v1143
    %v1145 = vand.u32 %v1144, 4294901760
    %1146 = vmatpush1.msra.mxu0 %v1145
    %1147 = vmatprep.subr.mxu0 0.0
    %v1148 = vand.u32 %v77, 4294901760
    %v1149 = vsub.f32 %v77, %v1148
    %v1150 = vand.u32 %v1149, 4294901760
    %1151 = vmatpush1.msra.mxu0 %v1150
    %1152 = vmatprep.subr.mxu0 0.0
    %v1153 = vand.u32 %v78, 4294901760
    %v1154 = vsub.f32 %v78, %v1153
    %v1155 = vand.u32 %v1154, 4294901760
    %1156 = vmatpush1.msra.mxu0 %v1155
    %1157 = vmatprep.subr.mxu0 0.0
    %v1158 = vand.u32 %v79, 4294901760
    %v1159 = vsub.f32 %v79, %v1158
    %v1160 = vand.u32 %v1159, 4294901760
    %1161 = vmatpush1.msra.mxu0 %v1160
    %1162 = vmatprep.subr.mxu0 0.0
    %v1163 = vand.u32 %v80, 4294901760
    %v1164 = vsub.f32 %v80, %v1163
    %v1165 = vand.u32 %v1164, 4294901760
    %1166 = vmatpush1.msra.mxu0 %v1165
    %1167 = vmatprep.subr.mxu0 0.0
    %v1168 = vand.u32 %v81, 4294901760
    %v1169 = vsub.f32 %v81, %v1168
    %v1170 = vand.u32 %v1169, 4294901760
    %1171 = vmatpush1.msra.mxu0 %v1170
    %1172 = vmatprep.subr.mxu0 0.0
    %v1173 = vand.u32 %v82, 4294901760
    %v1174 = vsub.f32 %v82, %v1173
    %v1175 = vand.u32 %v1174, 4294901760
    %1176 = vmatpush1.msra.mxu0 %v1175
    %1177 = vmatprep.subr.mxu0 0.0
    %v1178 = vand.u32 %v83, 4294901760
    %v1179 = vsub.f32 %v83, %v1178
    %v1180 = vand.u32 %v1179, 4294901760
    %1181 = vmatpush1.msra.mxu0 %v1180
    %1182 = vmatprep.subr.mxu0 0.0
    %1183 = vmatpush1.msra.mxu0 0.0
    %1184 = vmatprep.subr.mxu0 0.0
    %1185 = vmatpush1.msra.mxu0 0.0
    %1186 = vmatprep.subr.mxu0 0.0
    %1187 = vmatpush1.msra.mxu0 0.0
    %1188 = vmatprep.subr.mxu0 0.0
    %1189 = vmatpush1.msra.mxu0 0.0
    %1190 = vmatprep.subr.mxu0 0.0
    %1191 = vmatpush1.msra.mxu0 0.0
    %1192 = vmatprep.subr.mxu0 0.0
    %1193 = vmatpush1.msra.mxu0 0.0
    %1194 = vmatprep.subr.mxu0 0.0
    %1195 = vmatpush1.msra.mxu0 0.0
    %1196 = vmatprep.subr.mxu0 0.0
    %1197 = vmatpush1.msra.mxu0 0.0
    %1198 = vmatprep.subr.mxu0 0.0
    %1199 = vmatpush1.msra.mxu0 0.0
    %1200 = vmatprep.subr.mxu0 0.0
    %1201 = vmatpush1.msra.mxu0 0.0
    %1202 = vmatprep.subr.mxu0 0.0
    %1203 = vmatpush1.msra.mxu0 0.0
    %1204 = vmatprep.subr.mxu0 0.0
    %1205 = vmatpush1.msra.mxu0 0.0
    %1206 = vmatprep.subr.mxu0 0.0
    %1207 = vmatpush1.msra.mxu0 0.0
    %1208 = vmatprep.subr.mxu0 0.0
    %1209 = vmatpush1.msra.mxu0 0.0
    %1210 = vmatprep.subr.mxu0 0.0
    %1211 = vmatpush1.msra.mxu0 0.0
    %1212 = vmatprep.subr.mxu0 0.0
    %1213 = vmatpush1.msra.mxu0 0.0
    %1214 = vmatprep.subr.mxu0 0.0
    %1215 = vmatpush1.msra.mxu0 0.0
    %1216 = vmatprep.subr.mxu0 0.0
    %1217 = vmatpush1.msra.mxu0 0.0
    %1218 = vmatprep.subr.mxu0 0.0
    %1219 = vmatpush1.msra.mxu0 0.0
    %1220 = vmatprep.subr.mxu0 0.0
    %1221 = vmatpush1.msra.mxu0 0.0
    %1222 = vmatprep.subr.mxu0 0.0
    %1223 = vmatpush1.msra.mxu0 0.0
    %1224 = vmatprep.subr.mxu0 0.0
    %1225 = vmatpush1.msra.mxu0 0.0
    %1226 = vmatprep.subr.mxu0 0.0
    %1227 = vmatpush1.msra.mxu0 0.0
    %1228 = vmatprep.subr.mxu0 0.0
    %1229 = vmatpush1.msra.mxu0 0.0
    %1230 = vmatprep.mubr.f32.mxu0 0.0
    %v1231 = vand.u32 %v675, 4294901760
    %1232 = vmatmul.mubr.f32.gmra.mrb[0].mxu0 %v1231
    %v1233 = vpop.f32.mrb[0].mxu0
    %v1234 = vadd.f32 %v1115, %v1233
    %v1235 = vpop.f32.mrb[0].mxu0
    %1236 = vmatprep.mubr.f32.mxu0 0.0
    %v1237 = vand.u32 %v678, 4294901760
    %1238 = vmatmul.mubr.f32.gmra.mrb[0].mxu0 %v1237
    %v1239 = vpop.f32.mrb[0].mxu0
    %v1240 = vadd.f32 %v1123, %v1239
    %v1241 = vpop.f32.mrb[0].mxu0
    %1242 = vmatprep.mubr.f32.mxu0 0.0
    %v1243 = vand.u32 %v681, 4294901760
    %1244 = vmatmul.mubr.f32.gmra.mrb[0].mxu0 %v1243
    %v1245 = vpop.f32.mrb[0].mxu0
    %v1246 = vadd.f32 %v1131, %v1245
    %v1247 = vpop.f32.mrb[0].mxu0
    %1248 = vmatprep.mubr.f32.mxu0 0.0
    %v1249 = vand.u32 %v684, 4294901760
    %1250 = vmatmul.mubr.f32.gmra.mrb[0].mxu0 %v1249
    %v1251 = vpop.f32.mrb[0].mxu0
    %v1252 = vadd.f32 %v1139, %v1251
    %v1253 = vpop.f32.mrb[0].mxu0
    %1254 = vdwg.mxu0
    %1255 = vmatprep.subr.mxu0 0.0
    %v1256 = vand.u32 %v76, 4294901760
    %1257 = vmatpush1.msra.mxu0 %v1256
    %1258 = vmatprep.subr.mxu0 0.0
    %v1259 = vand.u32 %v77, 4294901760
    %1260 = vmatpush1.msra.mxu0 %v1259
    %1261 = vmatprep.subr.mxu0 0.0
    %v1262 = vand.u32 %v78, 4294901760
    %1263 = vmatpush1.msra.mxu0 %v1262
    %1264 = vmatprep.subr.mxu0 0.0
    %v1265 = vand.u32 %v79, 4294901760
    %1266 = vmatpush1.msra.mxu0 %v1265
    %1267 = vmatprep.subr.mxu0 0.0
    %v1268 = vand.u32 %v80, 4294901760
    %1269 = vmatpush1.msra.mxu0 %v1268
    %1270 = vmatprep.subr.mxu0 0.0
    %v1271 = vand.u32 %v81, 4294901760
    %1272 = vmatpush1.msra.mxu0 %v1271
    %1273 = vmatprep.subr.mxu0 0.0
    %v1274 = vand.u32 %v82, 4294901760
    %1275 = vmatpush1.msra.mxu0 %v1274
    %1276 = vmatprep.subr.mxu0 0.0
    %v1277 = vand.u32 %v83, 4294901760
    %1278 = vmatpush1.msra.mxu0 %v1277
    %1279 = vmatprep.subr.mxu0 0.0
    %1280 = vmatpush1.msra.mxu0 0.0
    %1281 = vmatprep.subr.mxu0 0.0
    %1282 = vmatpush1.msra.mxu0 0.0
    %1283 = vmatprep.subr.mxu0 0.0
    %1284 = vmatpush1.msra.mxu0 0.0
    %1285 = vmatprep.subr.mxu0 0.0
    %1286 = vmatpush1.msra.mxu0 0.0
    %1287 = vmatprep.subr.mxu0 0.0
    %1288 = vmatpush1.msra.mxu0 0.0
    %1289 = vmatprep.subr.mxu0 0.0
    %1290 = vmatpush1.msra.mxu0 0.0
    %1291 = vmatprep.subr.mxu0 0.0
    %1292 = vmatpush1.msra.mxu0 0.0
    %1293 = vmatprep.subr.mxu0 0.0
    %1294 = vmatpush1.msra.mxu0 0.0
    %1295 = vmatprep.subr.mxu0 0.0
    %1296 = vmatpush1.msra.mxu0 0.0
    %1297 = vmatprep.subr.mxu0 0.0
    %1298 = vmatpush1.msra.mxu0 0.0
    %1299 = vmatprep.subr.mxu0 0.0
    %1300 = vmatpush1.msra.mxu0 0.0
    %1301 = vmatprep.subr.mxu0 0.0
    %1302 = vmatpush1.msra.mxu0 0.0
    %1303 = vmatprep.subr.mxu0 0.0
    %1304 = vmatpush1.msra.mxu0 0.0
    %1305 = vmatprep.subr.mxu0 0.0
    %1306 = vmatpush1.msra.mxu0 0.0
    %1307 = vmatprep.subr.mxu0 0.0
    %1308 = vmatpush1.msra.mxu0 0.0
    %1309 = vmatprep.subr.mxu0 0.0
    %1310 = vmatpush1.msra.mxu0 0.0
    %1311 = vmatprep.subr.mxu0 0.0
    %1312 = vmatpush1.msra.mxu0 0.0
    %1313 = vmatprep.subr.mxu0 0.0
    %1314 = vmatpush1.msra.mxu0 0.0
    %1315 = vmatprep.subr.mxu0 0.0
    %1316 = vmatpush1.msra.mxu0 0.0
    %1317 = vmatprep.subr.mxu0 0.0
    %1318 = vmatpush1.msra.mxu0 0.0
    %1319 = vmatprep.subr.mxu0 0.0
    %1320 = vmatpush1.msra.mxu0 0.0
    %1321 = vmatprep.subr.mxu0 0.0
    %1322 = vmatpush1.msra.mxu0 0.0
    %1323 = vmatprep.subr.mxu0 0.0
    %1324 = vmatpush1.msra.mxu0 0.0
    %1325 = vmatprep.subr.mxu0 0.0
    %1326 = vmatpush1.msra.mxu0 0.0
    %1327 = vmatprep.mubr.f32.mxu0 0.0
    %v1328 = vand.u32 %v675, 4294901760
    %1329 = vmatmul.mubr.f32.gmra.mrb[0].mxu0 %v1328
    %v1330 = vpop.f32.mrb[0].mxu0
    %v1331 = vadd.f32 %v1234, %v1330
    %v1332 = vpop.f32.mrb[0].mxu0
    %1333 = vmatprep.mubr.f32.mxu0 0.0
    %v1334 = vand.u32 %v678, 4294901760
    %1335 = vmatmul.mubr.f32.gmra.mrb[0].mxu0 %v1334
    %v1336 = vpop.f32.mrb[0].mxu0
    %v1337 = vadd.f32 %v1240, %v1336
    %v1338 = vpop.f32.mrb[0].mxu0
    %1339 = vmatprep.mubr.f32.mxu0 0.0
    %v1340 = vand.u32 %v681, 4294901760
    %1341 = vmatmul.mubr.f32.gmra.mrb[0].mxu0 %v1340
    %v1342 = vpop.f32.mrb[0].mxu0
    %v1343 = vadd.f32 %v1246, %v1342
    %v1344 = vpop.f32.mrb[0].mxu0
    %1345 = vmatprep.mubr.f32.mxu0 0.0
    %v1346 = vand.u32 %v684, 4294901760
    %1347 = vmatmul.mubr.f32.gmra.mrb[0].mxu0 %v1346
    %v1348 = vpop.f32.mrb[0].mxu0
    %v1349 = vadd.f32 %v1252, %v1348
    %v1350 = vpop.f32.mrb[0].mxu0
    %1351 = vdwg.mxu0
    %1352 = vst [vmem:[#allocation2] sm:$0xff] %v1331
    %1353 = vst [vmem:[#allocation2 + $0x8] sm:$0xff] %v1337
    %1354 = vst [vmem:[#allocation2 + $0x10] sm:$0xff] %v1343
    %1355 = vst [vmem:[#allocation2 + $0x18] sm:$0xff] %v1349
    // Predicated region
    $region18: #{tpu_custom_call.1} parent=1 // pred_check
      _
    $region19: #{tpu_custom_call.1} parent=1 // pred_check_branch
      %1357 = sbr.rel (0) target = $region21
    $region20: #{tpu_custom_call.1} parent=1 // pred_region
      %s1359 = ssub.s32 512, 512
      %1360 = vsyncadd [#allocation3], %s1359
      %s1361 = sshll.u32 [#allocation2], 4
      %s1362 = int_to_ptr.vmem [resolvable:$true] %s1361
      %1367 = dma.vmem_to_hbm [thread:$0]  %s1362, 512, %s4, [#allocation3], 128, 128, 8
    $region21: #{tpu_custom_call.1} parent=1 // pred_fallthru
      _
    // Predicated region
    $region22: #{tpu_custom_call.1} parent=1 // pred_check
      _
    $region23: #{tpu_custom_call.1} parent=1 // pred_check_branch
      %1369 = sbr.rel (0) target = $region25
    $region24: #{tpu_custom_call.1} parent=1 // pred_region
      %1370 = dma.done [#allocation3], 512
    $region25: #{tpu_custom_call.1} parent=1 // pred_fallthru
      _
    %1371 = vsyncpa [#allocation3], 1

</llo_original>
